<compile_context>
chip_gen: v7x
topology: tpu7x:2x2x1
jax: 0.10.0
libtpu: 0.0.40
codegen_flags: <defaults>
</compile_context>

<pallas_src>
from functools import partial

import jax
import jax.numpy as jnp
from jax.experimental import pallas as pl
from jax.experimental.pallas import tpu as pltpu


def fused_conv_mlp_kernel(p_ref, w1_ref, b1_ref, w2_ref, b2_ref, o_ref):
    """One row-tile per grid step.

    p_ref : (TILE, K)      im2col patches               (K = KH*KW*Cin = 400)
    w1_ref: (K, Cmid)      conv1 weights, flattened     (Cmid = 132)
    b1_ref: (1, Cmid)
    w2_ref: (Cmid, Cout)   1x1 conv == channel matmul   (Cout = 16)
    b2_ref: (1, Cout)
    o_ref : (TILE, Cout)
    """
    h = jnp.dot(p_ref[...], w1_ref[...], preferred_element_type=jnp.float32)
    h = jnp.maximum(h + b1_ref[...], 0.0)                      # conv1 bias + relu
    out = jnp.dot(h, w2_ref[...], preferred_element_type=jnp.float32)
    o_ref[...] = (out + b2_ref[...]).astype(o_ref.dtype)       # conv2 bias


@partial(jax.jit, static_argnames=("tile",))
def model_forward(x_nchw, w1_hwio, b1, w2_io, b2, *, tile=512):
    """x_nchw: (N, 16, H, W) float32. Returns (N, 16, H-4, W-4) float32."""
    N, Cin, H, W = x_nchw.shape
    KH, KW, _, Cmid = w1_hwio.shape
    Cout = w2_io.shape[-1]
    Ho, Wo = H - KH + 1, W - KW + 1
    K = KH * KW * Cin
    rows = N * Ho * Wo

    # --- wrapper-side im2col (fused by XLA under jit), NCHW -> NHWC ---------
    x = jnp.transpose(x_nchw, (0, 2, 3, 1))                    # (N, H, W, Cin)
    patches = jnp.stack(
        [x[:, kh:kh + Ho, kw:kw + Wo, :]
         for kh in range(KH) for kw in range(KW)],
        axis=3)                                                # (N,Ho,Wo,KH*KW,Cin)
    patches = patches.reshape(rows, K)                         # (kh,kw,cin) order

    # Fixed row tile (bounded VMEM); shrink to the problem when it is small so
    # tiny inputs run as a single grid step on single-TC chips.
    row_tile = min(tile, -(-rows // 8) * 8)                    # multiple of 8
    num_tiles = -(-rows // row_tile)                           # ceil div
    rows_p = row_tile * num_tiles
    if rows_p != rows:                                         # only pad when ragged
        patches = jnp.pad(patches, ((0, rows_p - rows), (0, 0)))

    # Flatten conv1 weights to match the (kh, kw, cin) patch ordering.
    w1_flat = w1_hwio.reshape(K, Cmid)
    b1_2d = b1.reshape(1, Cmid)
    b2_2d = b2.reshape(1, Cout)

    out_flat = pl.pallas_call(
        fused_conv_mlp_kernel,
        out_shape=jax.ShapeDtypeStruct((rows_p, Cout), x.dtype),
        grid=(num_tiles,),
        in_specs=[
            pl.BlockSpec((row_tile, K), lambda i: (i, 0)),
            pl.BlockSpec((K, Cmid), lambda i: (0, 0)),
            pl.BlockSpec((1, Cmid), lambda i: (0, 0)),
            pl.BlockSpec((Cmid, Cout), lambda i: (0, 0)),
            pl.BlockSpec((1, Cout), lambda i: (0, 0)),
        ],
        out_specs=pl.BlockSpec((row_tile, Cout), lambda i: (i, 0)),
        compiler_params=pltpu.CompilerParams(
            dimension_semantics=("parallel",)),
    )(patches, w1_flat, b1_2d, w2_io, b2_2d)

    if rows_p != rows:
        out_flat = out_flat[:rows]
    out = out_flat.reshape(N, Ho, Wo, Cout)
    # transpose(1,2) twice in PyTorch is the identity -> just return conv2 out.
    return jnp.transpose(out, (0, 3, 1, 2))                    # NHWC -> NCHW


def _reference(x_nchw, w1_hwio, b1, w2_io, b2):
    """Pure-JAX reference (XLA conv) for a correctness check."""
    x = jnp.transpose(x_nchw, (0, 2, 3, 1))
    dn = jax.lax.conv_dimension_numbers(x.shape, w1_hwio.shape,
                                        ("NHWC", "HWIO", "NHWC"))
    v1 = jax.lax.conv_general_dilated(x, w1_hwio, (1, 1), "VALID",
                                      dimension_numbers=dn) + b1
    v2 = jnp.maximum(v1, 0.0)
    w2_hwio = w2_io[None, None, :, :]
    dn2 = jax.lax.conv_dimension_numbers(v2.shape, w2_hwio.shape,
                                         ("NHWC", "HWIO", "NHWC"))
    v3 = jax.lax.conv_general_dilated(v2, w2_hwio, (1, 1), "VALID",
                                      dimension_numbers=dn2) + b2
    return jnp.transpose(v3, (0, 3, 1, 2))


if __name__ == "__main__":
    key = jax.random.PRNGKey(0)
    k_x, k_w1, k_b1, k_w2, k_b2 = jax.random.split(key, 5)

    # Small shapes consistent with the module: Cin must be 16; use N=2, H=W=16.
    N, Cin, H, W = 2, 16, 16, 16
    Cmid, Cout = 132, 16
    KH = KW = 5

    x = jax.random.normal(k_x, (N, Cin, H, W), dtype=jnp.float32)

    # Deterministic synthetic parameters (shapes match nn.Conv2d definitions).
    w1 = 0.05 * jax.random.normal(k_w1, (KH, KW, Cin, Cmid), dtype=jnp.float32)
    b1 = 0.05 * jax.random.normal(k_b1, (Cmid,), dtype=jnp.float32)
    w2 = 0.05 * jax.random.normal(k_w2, (Cmid, Cout), dtype=jnp.float32)
    b2 = 0.05 * jax.random.normal(k_b2, (Cout,), dtype=jnp.float32)

    out = jax.block_until_ready(model_forward(x, w1, b1, w2, b2))
    assert out.shape == (N, Cout, H - 4, W - 4), out.shape

    ref = jax.block_until_ready(_reference(x, w1, b1, w2, b2))
    assert jnp.allclose(out, ref, atol=1e-4, rtol=1e-4), (
        float(jnp.max(jnp.abs(out - ref))))

    print("KERNEL_OK")
</pallas_src>

<mosaic_0001>
module attributes {stable_mosaic.version = 11 : i64} {
  func.func @fused_conv_mlp_kernel(%arg0: i32, %arg1: memref<288x400xf32, #tpu.memory_space<vmem>>, %arg2: memref<400x132xf32, #tpu.memory_space<vmem>>, %arg3: memref<1x132xf32, #tpu.memory_space<vmem>>, %arg4: memref<132x16xf32, #tpu.memory_space<vmem>>, %arg5: memref<1x16xf32, #tpu.memory_space<vmem>>, %arg6: memref<288x16xf32, #tpu.memory_space<vmem>>) attributes {dimension_semantics = [#tpu.dimension_semantics<parallel>], iteration_bounds = array<i64: 1>, scalar_prefetch = 0 : i64, scratch_operands = 0 : i64, tpu.core_type = #tpu.core_type<tc>, window_params = [{transform_indices = @transform_0, window_bounds = array<i64: 288, 400>}, {pipeline_mode = #tpu.pipeline_mode<synchronous>, transform_indices = @transform_1, window_bounds = array<i64: 400, 132>}, {pipeline_mode = #tpu.pipeline_mode<synchronous>, transform_indices = @transform_2, window_bounds = array<i64: 1, 132>}, {pipeline_mode = #tpu.pipeline_mode<synchronous>, transform_indices = @transform_3, window_bounds = array<i64: 132, 16>}, {pipeline_mode = #tpu.pipeline_mode<synchronous>, transform_indices = @transform_4, window_bounds = array<i64: 1, 16>}, {transform_indices = @transform_5, window_bounds = array<i64: 288, 16>}]} {
    %c0 = arith.constant 0 : index
    %c0_0 = arith.constant 0 : index
    %0 = vector.load %arg1[%c0, %c0_0] : memref<288x400xf32, #tpu.memory_space<vmem>>, vector<288x400xf32>
    %c0_1 = arith.constant 0 : index
    %c0_2 = arith.constant 0 : index
    %1 = vector.load %arg2[%c0_1, %c0_2] : memref<400x132xf32, #tpu.memory_space<vmem>>, vector<400x132xf32>
    %cst = arith.constant dense<0.000000e+00> : vector<288x132xf32>
    %2 = tpu.matmul %0, %1, %cst {dimension_numbers = #tpu.dot_dimension_numbers<[1], [0], [0], [1], [0, 0, 1, 1], [], []>} : vector<288x400xf32>, vector<400x132xf32>, vector<288x132xf32> -> vector<288x132xf32>
    %c0_3 = arith.constant 0 : index
    %c0_4 = arith.constant 0 : index
    %3 = vector.load %arg3[%c0_3, %c0_4] : memref<1x132xf32, #tpu.memory_space<vmem>>, vector<1x132xf32>
    %4 = vector.broadcast %3 : vector<1x132xf32> to vector<288x132xf32>
    %5 = arith.addf %2, %4 : vector<288x132xf32>
    %cst_5 = arith.constant 0.000000e+00 : f32
    %6 = vector.broadcast %cst_5 : f32 to vector<288x132xf32>
    %7 = arith.maximumf %5, %6 : vector<288x132xf32>
    %c0_6 = arith.constant 0 : index
    %c0_7 = arith.constant 0 : index
    %8 = vector.load %arg4[%c0_6, %c0_7] : memref<132x16xf32, #tpu.memory_space<vmem>>, vector<132x16xf32>
    %cst_8 = arith.constant dense<0.000000e+00> : vector<288x16xf32>
    %9 = tpu.matmul %7, %8, %cst_8 {dimension_numbers = #tpu.dot_dimension_numbers<[1], [0], [0], [1], [0, 0, 1, 1], [], []>} : vector<288x132xf32>, vector<132x16xf32>, vector<288x16xf32> -> vector<288x16xf32>
    %c0_9 = arith.constant 0 : index
    %c0_10 = arith.constant 0 : index
    %10 = vector.load %arg5[%c0_9, %c0_10] : memref<1x16xf32, #tpu.memory_space<vmem>>, vector<1x16xf32>
    %11 = vector.broadcast %10 : vector<1x16xf32> to vector<288x16xf32>
    %12 = arith.addf %9, %11 : vector<288x16xf32>
    %c0_11 = arith.constant 0 : index
    %c0_12 = arith.constant 0 : index
    %13 = vector.load %arg6[%c0_11, %c0_12] : memref<288x16xf32, #tpu.memory_space<vmem>>, vector<288x16xf32>
    tpu.vector_store %arg6[%c0_11, %c0_12], %12 {strides = array<i32>} : memref<288x16xf32, #tpu.memory_space<vmem>>, vector<288x16xf32>,
    return
  }
  func.func @transform_0(%arg0: i32) -> (i32, i32) {
    %c0_i32 = arith.constant 0 : i32
    %c0_i32_0 = arith.constant 0 : i32
    return %arg0, %c0_i32 : i32, i32
  }
  func.func @transform_1(%arg0: i32) -> (i32, i32) {
    %c0_i32 = arith.constant 0 : i32
    %c0_i32_0 = arith.constant 0 : i32
    %c0_i32_1 = arith.constant 0 : i32
    return %c0_i32, %c0_i32_0 : i32, i32
  }
  func.func @transform_2(%arg0: i32) -> (i32, i32) {
    %c0_i32 = arith.constant 0 : i32
    %c0_i32_0 = arith.constant 0 : i32
    %c0_i32_1 = arith.constant 0 : i32
    return %c0_i32, %c0_i32_0 : i32, i32
  }
  func.func @transform_3(%arg0: i32) -> (i32, i32) {
    %c0_i32 = arith.constant 0 : i32
    %c0_i32_0 = arith.constant 0 : i32
    %c0_i32_1 = arith.constant 0 : i32
    return %c0_i32, %c0_i32_0 : i32, i32
  }
  func.func @transform_4(%arg0: i32) -> (i32, i32) {
    %c0_i32 = arith.constant 0 : i32
    %c0_i32_0 = arith.constant 0 : i32
    %c0_i32_1 = arith.constant 0 : i32
    return %c0_i32, %c0_i32_0 : i32, i32
  }
  func.func @transform_5(%arg0: i32) -> (i32, i32) {
    %c0_i32 = arith.constant 0 : i32
    %c0_i32_0 = arith.constant 0 : i32
    return %arg0, %c0_i32 : i32, i32
  }
}

</mosaic_0001>

<llo_original>
// kernel: model_forward.1
$region0: #{model_forward.1}
  #allocation0 [shape = 'u32[]', space=smem, size = 0x4, offset = 0x4, fixed_abs, tag = 'smem constant byte address 0x4 - core index']
  #allocation1 [shape = 'u32[144,128]{1,0:T(1,128)}', space=vmem, size = 0x12000, scoped, tag = 'internal scratch']
  %s0 = inlined_call_operand.vmem [shape: f32[288,400], index: 0, kind: input, shape index: {}]
  %s1 = inlined_call_operand.vmem [shape: f32[400,132], index: 1, kind: input, shape index: {}]
  %s2 = inlined_call_operand.vmem [shape: f32[1,132], index: 2, kind: input, shape index: {}]
  %s3 = inlined_call_operand.vmem [shape: f32[132,16], index: 3, kind: input, shape index: {}]
  %s4 = inlined_call_operand.vmem [shape: f32[1,16], index: 4, kind: input, shape index: {}]
  %s5 = inlined_call_operand.vmem [shape: f32[288,16], index: 5, kind: output, shape index: {}]
  %s6 = sld [smem:[#allocation0]]
  $region30: #{model_forward.1} parent=0
    _
  %s8 = ssub.s32 1, %s6
  %s9 = scalar_select 0, %s8, %s6
  // Predicated region
  $region2: #{model_forward.1} parent=0 // pred_check
    _
  $region3: #{model_forward.1} parent=0 // pred_check_branch
    %11 = sbr.rel (0) target = $region5
  $region4: #{model_forward.1} parent=0 // pred_region
    _
  $region5: #{model_forward.1} parent=0 // pred_fallthru
    _
  // Predicated region
  $region6: #{model_forward.1} parent=0 // pred_check
    _
  $region7: #{model_forward.1} parent=0 // pred_check_branch
    %13 = sbr.rel (0) target = $region9
  $region8: #{model_forward.1} parent=0 // pred_region
    _
  $region9: #{model_forward.1} parent=0 // pred_fallthru
    _
  // Predicated region
  $region10: #{model_forward.1} parent=0 // pred_check
    _
  $region11: #{model_forward.1} parent=0 // pred_check_branch
    %15 = sbr.rel (0) target = $region13
  $region12: #{model_forward.1} parent=0 // pred_region
    _
  $region13: #{model_forward.1} parent=0 // pred_fallthru
    _
  // Predicated region
  $region14: #{model_forward.1} parent=0 // pred_check
    _
  $region15: #{model_forward.1} parent=0 // pred_check_branch
    %17 = sbr.rel (0) target = $region17
  $region16: #{model_forward.1} parent=0 // pred_region
    _
  $region17: #{model_forward.1} parent=0 // pred_fallthru
    _
  // Predicated region
  $region18: #{model_forward.1} parent=0 // pred_check
    _
  $region19: #{model_forward.1} parent=0 // pred_check_branch
    %19 = sbr.rel (0) target = $region21
  $region20: #{model_forward.1} parent=0 // pred_region
    _
  $region21: #{model_forward.1} parent=0 // pred_fallthru
    _
  %v20 = vld [vmem:[%s0] sm:$0xff]
  %v21 = vld [vmem:[%s0 + $0x8] sm:$0xff]
  %v22 = vld [vmem:[%s0 + $0x10] sm:$0xff]
  %v23 = vld [vmem:[%s0 + $0x18] sm:$0xff]
  %v24 = vld [vmem:[%s0 + $0x20] sm:$0xff]
  %v25 = vld [vmem:[%s0 + $0x28] sm:$0xff]
  %v26 = vld [vmem:[%s0 + $0x30] sm:$0xff]
  %v27 = vld [vmem:[%s0 + $0x38] sm:$0xff]
  %v28 = vld [vmem:[%s0 + $0x40] sm:$0xff]
  %v29 = vld [vmem:[%s0 + $0x48] sm:$0xff]
  %v30 = vld [vmem:[%s0 + $0x50] sm:$0xff]
  %v31 = vld [vmem:[%s0 + $0x58] sm:$0xff]
  %v32 = vld [vmem:[%s0 + $0x60] sm:$0xff]
  %v33 = vld [vmem:[%s0 + $0x68] sm:$0xff]
  %v34 = vld [vmem:[%s0 + $0x70] sm:$0xff]
  %v35 = vld [vmem:[%s0 + $0x78] sm:$0xff]
  %v36 = vld [vmem:[%s0 + $0x80] sm:$0xff]
  %v37 = vld [vmem:[%s0 + $0x88] sm:$0xff]
  %v38 = vld [vmem:[%s0 + $0x90] sm:$0xff]
  %v39 = vld [vmem:[%s0 + $0x98] sm:$0xff]
  %v40 = vld [vmem:[%s0 + $0xa0] sm:$0xff]
  %v41 = vld [vmem:[%s0 + $0xa8] sm:$0xff]
  %v42 = vld [vmem:[%s0 + $0xb0] sm:$0xff]
  %v43 = vld [vmem:[%s0 + $0xb8] sm:$0xff]
  %v44 = vld [vmem:[%s0 + $0xc0] sm:$0xff]
  %v45 = vld [vmem:[%s0 + $0xc8] sm:$0xff]
  %v46 = vld [vmem:[%s0 + $0xd0] sm:$0xff]
  %v47 = vld [vmem:[%s0 + $0xd8] sm:$0xff]
  %v48 = vld [vmem:[%s0 + $0xe0] sm:$0xff]
  %v49 = vld [vmem:[%s0 + $0xe8] sm:$0xff]
  %v50 = vld [vmem:[%s0 + $0xf0] sm:$0xff]
  %v51 = vld [vmem:[%s0 + $0xf8] sm:$0xff]
  %v52 = vld [vmem:[%s0 + $0x100] sm:$0xff]
  %v53 = vld [vmem:[%s0 + $0x108] sm:$0xff]
  %v54 = vld [vmem:[%s0 + $0x110] sm:$0xff]
  %v55 = vld [vmem:[%s0 + $0x118] sm:$0xff]
  %v56 = vld [vmem:[%s0 + $0x120] sm:$0xff]
  %v57 = vld [vmem:[%s0 + $0x128] sm:$0xff]
  %v58 = vld [vmem:[%s0 + $0x130] sm:$0xff]
  %v59 = vld [vmem:[%s0 + $0x138] sm:$0xff]
  %v60 = vld [vmem:[%s0 + $0x140] sm:$0xff]
  %v61 = vld [vmem:[%s0 + $0x148] sm:$0xff]
  %v62 = vld [vmem:[%s0 + $0x150] sm:$0xff]
  %v63 = vld [vmem:[%s0 + $0x158] sm:$0xff]
  %v64 = vld [vmem:[%s0 + $0x160] sm:$0xff]
  %v65 = vld [vmem:[%s0 + $0x168] sm:$0xff]
  %v66 = vld [vmem:[%s0 + $0x170] sm:$0xff]
  %v67 = vld [vmem:[%s0 + $0x178] sm:$0xff]
  %v68 = vld [vmem:[%s0 + $0x180] sm:$0xff]
  %v69 = vld [vmem:[%s0 + $0x188] sm:$0xff]
  %v70 = vld [vmem:[%s0 + $0x190] sm:$0xff]
  %v71 = vld [vmem:[%s0 + $0x198] sm:$0xff]
  %v72 = vld [vmem:[%s0 + $0x1a0] sm:$0xff]
  %v73 = vld [vmem:[%s0 + $0x1a8] sm:$0xff]
  %v74 = vld [vmem:[%s0 + $0x1b0] sm:$0xff]
  %v75 = vld [vmem:[%s0 + $0x1b8] sm:$0xff]
  %v76 = vld [vmem:[%s0 + $0x1c0] sm:$0xff]
  %v77 = vld [vmem:[%s0 + $0x1c8] sm:$0xff]
  %v78 = vld [vmem:[%s0 + $0x1d0] sm:$0xff]
  %v79 = vld [vmem:[%s0 + $0x1d8] sm:$0xff]
  %v80 = vld [vmem:[%s0 + $0x1e0] sm:$0xff]
  %v81 = vld [vmem:[%s0 + $0x1e8] sm:$0xff]
  %v82 = vld [vmem:[%s0 + $0x1f0] sm:$0xff]
  %v83 = vld [vmem:[%s0 + $0x1f8] sm:$0xff]
  %v84 = vld [vmem:[%s0 + $0x200] sm:$0xff]
  %v85 = vld [vmem:[%s0 + $0x208] sm:$0xff]
  %v86 = vld [vmem:[%s0 + $0x210] sm:$0xff]
  %v87 = vld [vmem:[%s0 + $0x218] sm:$0xff]
  %v88 = vld [vmem:[%s0 + $0x220] sm:$0xff]
  %v89 = vld [vmem:[%s0 + $0x228] sm:$0xff]
  %v90 = vld [vmem:[%s0 + $0x230] sm:$0xff]
  %v91 = vld [vmem:[%s0 + $0x238] sm:$0xff]
  %v92 = vld [vmem:[%s0 + $0x240] sm:$0xff]
  %v93 = vld [vmem:[%s0 + $0x248] sm:$0xff]
  %v94 = vld [vmem:[%s0 + $0x250] sm:$0xff]
  %v95 = vld [vmem:[%s0 + $0x258] sm:$0xff]
  %v96 = vld [vmem:[%s0 + $0x260] sm:$0xff]
  %v97 = vld [vmem:[%s0 + $0x268] sm:$0xff]
  %v98 = vld [vmem:[%s0 + $0x270] sm:$0xff]
  %v99 = vld [vmem:[%s0 + $0x278] sm:$0xff]
  %v100 = vld [vmem:[%s0 + $0x280] sm:$0xff]
  %v101 = vld [vmem:[%s0 + $0x288] sm:$0xff]
  %v102 = vld [vmem:[%s0 + $0x290] sm:$0xff]
  %v103 = vld [vmem:[%s0 + $0x298] sm:$0xff]
  %v104 = vld [vmem:[%s0 + $0x2a0] sm:$0xff]
  %v105 = vld [vmem:[%s0 + $0x2a8] sm:$0xff]
  %v106 = vld [vmem:[%s0 + $0x2b0] sm:$0xff]
  %v107 = vld [vmem:[%s0 + $0x2b8] sm:$0xff]
  %v108 = vld [vmem:[%s0 + $0x2c0] sm:$0xff]
  %v109 = vld [vmem:[%s0 + $0x2c8] sm:$0xff]
  %v110 = vld [vmem:[%s0 + $0x2d0] sm:$0xff]
  %v111 = vld [vmem:[%s0 + $0x2d8] sm:$0xff]
  %v112 = vld [vmem:[%s0 + $0x2e0] sm:$0xff]
  %v113 = vld [vmem:[%s0 + $0x2e8] sm:$0xff]
  %v114 = vld [vmem:[%s0 + $0x2f0] sm:$0xff]
  %v115 = vld [vmem:[%s0 + $0x2f8] sm:$0xff]
  %v116 = vld [vmem:[%s0 + $0x300] sm:$0xff]
  %v117 = vld [vmem:[%s0 + $0x308] sm:$0xff]
  %v118 = vld [vmem:[%s0 + $0x310] sm:$0xff]
  %v119 = vld [vmem:[%s0 + $0x318] sm:$0xff]
  %v120 = vld [vmem:[%s0 + $0x320] sm:$0xff]
  %v121 = vld [vmem:[%s0 + $0x328] sm:$0xff]
  %v122 = vld [vmem:[%s0 + $0x330] sm:$0xff]
  %v123 = vld [vmem:[%s0 + $0x338] sm:$0xff]
  %v124 = vld [vmem:[%s0 + $0x340] sm:$0xff]
  %v125 = vld [vmem:[%s0 + $0x348] sm:$0xff]
  %v126 = vld [vmem:[%s0 + $0x350] sm:$0xff]
  %v127 = vld [vmem:[%s0 + $0x358] sm:$0xff]
  %v128 = vld [vmem:[%s0 + $0x360] sm:$0xff]
  %v129 = vld [vmem:[%s0 + $0x368] sm:$0xff]
  %v130 = vld [vmem:[%s0 + $0x370] sm:$0xff]
  %v131 = vld [vmem:[%s0 + $0x378] sm:$0xff]
  %v132 = vld [vmem:[%s0 + $0x380] sm:$0xff]
  %v133 = vld [vmem:[%s0 + $0x388] sm:$0xff]
  %v134 = vld [vmem:[%s0 + $0x390] sm:$0xff]
  %v135 = vld [vmem:[%s0 + $0x398] sm:$0xff]
  %v136 = vld [vmem:[%s0 + $0x3a0] sm:$0xff]
  %v137 = vld [vmem:[%s0 + $0x3a8] sm:$0xff]
  %v138 = vld [vmem:[%s0 + $0x3b0] sm:$0xff]
  %v139 = vld [vmem:[%s0 + $0x3b8] sm:$0xff]
  %v140 = vld [vmem:[%s0 + $0x3c0] sm:$0xff]
  %v141 = vld [vmem:[%s0 + $0x3c8] sm:$0xff]
  %v142 = vld [vmem:[%s0 + $0x3d0] sm:$0xff]
  %v143 = vld [vmem:[%s0 + $0x3d8] sm:$0xff]
  %v144 = vld [vmem:[%s0 + $0x3e0] sm:$0xff]
  %v145 = vld [vmem:[%s0 + $0x3e8] sm:$0xff]
  %v146 = vld [vmem:[%s0 + $0x3f0] sm:$0xff]
  %v147 = vld [vmem:[%s0 + $0x3f8] sm:$0xff]
  %v148 = vld [vmem:[%s0 + $0x400] sm:$0xff]
  %v149 = vld [vmem:[%s0 + $0x408] sm:$0xff]
  %v150 = vld [vmem:[%s0 + $0x410] sm:$0xff]
  %v151 = vld [vmem:[%s0 + $0x418] sm:$0xff]
  %v152 = vld [vmem:[%s0 + $0x420] sm:$0xff]
  %v153 = vld [vmem:[%s0 + $0x428] sm:$0xff]
  %v154 = vld [vmem:[%s0 + $0x430] sm:$0xff]
  %v155 = vld [vmem:[%s0 + $0x438] sm:$0xff]
  %v156 = vld [vmem:[%s0 + $0x440] sm:$0xff]
  %v157 = vld [vmem:[%s0 + $0x448] sm:$0xff]
  %v158 = vld [vmem:[%s0 + $0x450] sm:$0xff]
  %v159 = vld [vmem:[%s0 + $0x458] sm:$0xff]
  %v160 = vld [vmem:[%s0 + $0x460] sm:$0xff]
  %v161 = vld [vmem:[%s0 + $0x468] sm:$0xff]
  %v162 = vld [vmem:[%s0 + $0x470] sm:$0xff]
  %v163 = vld [vmem:[%s0 + $0x478] sm:$0xff]
  %v164 = vld [vmem:[%s1] sm:$0xff]
  %v165 = vld [vmem:[%s1 + $0x8] sm:$0xff]
  %v166 = vld [vmem:[%s1 + $0x10] sm:$0xff]
  %v167 = vld [vmem:[%s1 + $0x18] sm:$0xff]
  %v168 = vld [vmem:[%s1 + $0x20] sm:$0xff]
  %v169 = vld [vmem:[%s1 + $0x28] sm:$0xff]
  %v170 = vld [vmem:[%s1 + $0x30] sm:$0xff]
  %v171 = vld [vmem:[%s1 + $0x38] sm:$0xff]
  %v172 = vld [vmem:[%s1 + $0x40] sm:$0xff]
  %v173 = vld [vmem:[%s1 + $0x48] sm:$0xff]
  %v174 = vld [vmem:[%s1 + $0x50] sm:$0xff]
  %v175 = vld [vmem:[%s1 + $0x58] sm:$0xff]
  %v176 = vld [vmem:[%s1 + $0x60] sm:$0xff]
  %v177 = vld [vmem:[%s1 + $0x68] sm:$0xff]
  %v178 = vld [vmem:[%s1 + $0x70] sm:$0xff]
  %v179 = vld [vmem:[%s1 + $0x78] sm:$0xff]
  %v180 = vld [vmem:[%s1 + $0x80] sm:$0xff]
  %v181 = vld [vmem:[%s1 + $0x88] sm:$0xff]
  %v182 = vld [vmem:[%s1 + $0x90] sm:$0xff]
  %v183 = vld [vmem:[%s1 + $0x98] sm:$0xff]
  %v184 = vld [vmem:[%s1 + $0xa0] sm:$0xff]
  %v185 = vld [vmem:[%s1 + $0xa8] sm:$0xff]
  %v186 = vld [vmem:[%s1 + $0xb0] sm:$0xff]
  %v187 = vld [vmem:[%s1 + $0xb8] sm:$0xff]
  %v188 = vld [vmem:[%s1 + $0xc0] sm:$0xff]
  %v189 = vld [vmem:[%s1 + $0xc8] sm:$0xff]
  %v190 = vld [vmem:[%s1 + $0xd0] sm:$0xff]
  %v191 = vld [vmem:[%s1 + $0xd8] sm:$0xff]
  %v192 = vld [vmem:[%s1 + $0xe0] sm:$0xff]
  %v193 = vld [vmem:[%s1 + $0xe8] sm:$0xff]
  %v194 = vld [vmem:[%s1 + $0xf0] sm:$0xff]
  %v195 = vld [vmem:[%s1 + $0xf8] sm:$0xff]
  %v196 = vld [vmem:[%s1 + $0x100] sm:$0xff]
  %v197 = vld [vmem:[%s1 + $0x108] sm:$0xff]
  %v198 = vld [vmem:[%s1 + $0x110] sm:$0xff]
  %v199 = vld [vmem:[%s1 + $0x118] sm:$0xff]
  %v200 = vld [vmem:[%s1 + $0x120] sm:$0xff]
  %v201 = vld [vmem:[%s1 + $0x128] sm:$0xff]
  %v202 = vld [vmem:[%s1 + $0x130] sm:$0xff]
  %v203 = vld [vmem:[%s1 + $0x138] sm:$0xff]
  %v204 = vld [vmem:[%s1 + $0x140] sm:$0xff]
  %v205 = vld [vmem:[%s1 + $0x148] sm:$0xff]
  %v206 = vld [vmem:[%s1 + $0x150] sm:$0xff]
  %v207 = vld [vmem:[%s1 + $0x158] sm:$0xff]
  %v208 = vld [vmem:[%s1 + $0x160] sm:$0xff]
  %v209 = vld [vmem:[%s1 + $0x168] sm:$0xff]
  %v210 = vld [vmem:[%s1 + $0x170] sm:$0xff]
  %v211 = vld [vmem:[%s1 + $0x178] sm:$0xff]
  %v212 = vld [vmem:[%s1 + $0x180] sm:$0xff]
  %v213 = vld [vmem:[%s1 + $0x188] sm:$0xff]
  %v214 = vld [vmem:[%s1 + $0x190] sm:$0xff]
  %v215 = vld [vmem:[%s1 + $0x198] sm:$0xff]
  %v216 = vld [vmem:[%s1 + $0x1a0] sm:$0xff]
  %v217 = vld [vmem:[%s1 + $0x1a8] sm:$0xff]
  %v218 = vld [vmem:[%s1 + $0x1b0] sm:$0xff]
  %v219 = vld [vmem:[%s1 + $0x1b8] sm:$0xff]
  %v220 = vld [vmem:[%s1 + $0x1c0] sm:$0xff]
  %v221 = vld [vmem:[%s1 + $0x1c8] sm:$0xff]
  %v222 = vld [vmem:[%s1 + $0x1d0] sm:$0xff]
  %v223 = vld [vmem:[%s1 + $0x1d8] sm:$0xff]
  %v224 = vld [vmem:[%s1 + $0x1e0] sm:$0xff]
  %v225 = vld [vmem:[%s1 + $0x1e8] sm:$0xff]
  %v226 = vld [vmem:[%s1 + $0x1f0] sm:$0xff]
  %v227 = vld [vmem:[%s1 + $0x1f8] sm:$0xff]
  %v228 = vld [vmem:[%s1 + $0x200] sm:$0xff]
  %v229 = vld [vmem:[%s1 + $0x208] sm:$0xff]
  %v230 = vld [vmem:[%s1 + $0x210] sm:$0xff]
  %v231 = vld [vmem:[%s1 + $0x218] sm:$0xff]
  %v232 = vld [vmem:[%s1 + $0x220] sm:$0xff]
  %v233 = vld [vmem:[%s1 + $0x228] sm:$0xff]
  %v234 = vld [vmem:[%s1 + $0x230] sm:$0xff]
  %v235 = vld [vmem:[%s1 + $0x238] sm:$0xff]
  %v236 = vld [vmem:[%s1 + $0x240] sm:$0xff]
  %v237 = vld [vmem:[%s1 + $0x248] sm:$0xff]
  %v238 = vld [vmem:[%s1 + $0x250] sm:$0xff]
  %v239 = vld [vmem:[%s1 + $0x258] sm:$0xff]
  %v240 = vld [vmem:[%s1 + $0x260] sm:$0xff]
  %v241 = vld [vmem:[%s1 + $0x268] sm:$0xff]
  %v242 = vld [vmem:[%s1 + $0x270] sm:$0xff]
  %v243 = vld [vmem:[%s1 + $0x278] sm:$0xff]
  %v244 = vld [vmem:[%s1 + $0x280] sm:$0xff]
  %v245 = vld [vmem:[%s1 + $0x288] sm:$0xff]
  %v246 = vld [vmem:[%s1 + $0x290] sm:$0xff]
  %v247 = vld [vmem:[%s1 + $0x298] sm:$0xff]
  %v248 = vld [vmem:[%s1 + $0x2a0] sm:$0xff]
  %v249 = vld [vmem:[%s1 + $0x2a8] sm:$0xff]
  %v250 = vld [vmem:[%s1 + $0x2b0] sm:$0xff]
  %v251 = vld [vmem:[%s1 + $0x2b8] sm:$0xff]
  %v252 = vld [vmem:[%s1 + $0x2c0] sm:$0xff]
  %v253 = vld [vmem:[%s1 + $0x2c8] sm:$0xff]
  %v254 = vld [vmem:[%s1 + $0x2d0] sm:$0xff]
  %v255 = vld [vmem:[%s1 + $0x2d8] sm:$0xff]
  %v256 = vld [vmem:[%s1 + $0x2e0] sm:$0xff]
  %v257 = vld [vmem:[%s1 + $0x2e8] sm:$0xff]
  %v258 = vld [vmem:[%s1 + $0x2f0] sm:$0xff]
  %v259 = vld [vmem:[%s1 + $0x2f8] sm:$0xff]
  %v260 = vld [vmem:[%s1 + $0x300] sm:$0xff]
  %v261 = vld [vmem:[%s1 + $0x308] sm:$0xff]
  %v262 = vld [vmem:[%s1 + $0x310] sm:$0xff]
  %v263 = vld [vmem:[%s1 + $0x318] sm:$0xff]
  %v264 = vld [vmem:[%s2] sm:$0x3]
  %v266 = vlaneseq
  %v267 = vshrl.u32 %v266, 7
  %v268 = vsub.s32 0, %v267
  %v269 = vrot.slane %v264, %v268
  %v270 = vlaneseq
  %v271 = vshrl.u32 %v270, 7
  %v272 = vsub.s32 1, %v271
  %v273 = vrot.slane %v264, %v272
  %vm276 = vcmask 130048
  %v278 = vsel %vm276, %v23, 0
  %v281 = vsel %vm276, %v27, 0
  %v284 = vsel %vm276, %v31, 0
  %v287 = vsel %vm276, %v35, 0
  %v290 = vsel %vm276, %v39, 0
  %v293 = vsel %vm276, %v43, 0
  %v296 = vsel %vm276, %v47, 0
  %v299 = vsel %vm276, %v51, 0
  %v302 = vsel %vm276, %v55, 0
  %v305 = vsel %vm276, %v59, 0
  %v308 = vsel %vm276, %v63, 0
  %v311 = vsel %vm276, %v67, 0
  %v314 = vsel %vm276, %v71, 0
  %v317 = vsel %vm276, %v75, 0
  %v320 = vsel %vm276, %v79, 0
  %v323 = vsel %vm276, %v83, 0
  %v326 = vsel %vm276, %v87, 0
  %v329 = vsel %vm276, %v91, 0
  %v332 = vsel %vm276, %v95, 0
  %v335 = vsel %vm276, %v99, 0
  %v338 = vsel %vm276, %v103, 0
  %v341 = vsel %vm276, %v107, 0
  %v344 = vsel %vm276, %v111, 0
  %v347 = vsel %vm276, %v115, 0
  %v350 = vsel %vm276, %v119, 0
  %v353 = vsel %vm276, %v123, 0
  %v356 = vsel %vm276, %v127, 0
  %v359 = vsel %vm276, %v131, 0
  %v362 = vsel %vm276, %v135, 0
  %v365 = vsel %vm276, %v139, 0
  %v368 = vsel %vm276, %v143, 0
  %v371 = vsel %vm276, %v147, 0
  %v374 = vsel %vm276, %v151, 0
  %v377 = vsel %vm276, %v155, 0
  %v380 = vsel %vm276, %v159, 0
  %v383 = vsel %vm276, %v163, 0
  %385 = vmatprep.subr.mxu0 %v165
  %386 = vmatpush1.msra.mxu0 %v164
  %387 = vmatprep.subr.mxu0 %v167
  %388 = vmatpush1.msra.mxu0 %v166
  %389 = vmatprep.subr.mxu0 %v169
  %390 = vmatpush1.msra.mxu0 %v168
  %391 = vmatprep.subr.mxu0 %v171
  %392 = vmatpush1.msra.mxu0 %v170
  %393 = vmatprep.subr.mxu0 %v173
  %394 = vmatpush1.msra.mxu0 %v172
  %395 = vmatprep.subr.mxu0 %v175
  %396 = vmatpush1.msra.mxu0 %v174
  %397 = vmatprep.subr.mxu0 %v177
  %398 = vmatpush1.msra.mxu0 %v176
  %399 = vmatprep.subr.mxu0 %v179
  %400 = vmatpush1.msra.mxu0 %v178
  %401 = vmatprep.subr.mxu0 %v181
  %402 = vmatpush1.msra.mxu0 %v180
  %403 = vmatprep.subr.mxu0 %v183
  %404 = vmatpush1.msra.mxu0 %v182
  %405 = vmatprep.subr.mxu0 %v185
  %406 = vmatpush1.msra.mxu0 %v184
  %407 = vmatprep.subr.mxu0 %v187
  %408 = vmatpush1.msra.mxu0 %v186
  %409 = vmatprep.subr.mxu0 %v189
  %410 = vmatpush1.msra.mxu0 %v188
  %411 = vmatprep.subr.mxu0 %v191
  %412 = vmatpush1.msra.mxu0 %v190
  %413 = vmatprep.subr.mxu0 %v193
  %414 = vmatpush1.msra.mxu0 %v192
  %415 = vmatprep.subr.mxu0 %v195
  %416 = vmatpush1.msra.mxu0 %v194
  %417 = vmatprep.subr.mxu0 %v197
  %418 = vmatpush1.msra.mxu0 %v196
  %419 = vmatprep.subr.mxu0 %v199
  %420 = vmatpush1.msra.mxu0 %v198
  %421 = vmatprep.subr.mxu0 %v201
  %422 = vmatpush1.msra.mxu0 %v200
  %423 = vmatprep.subr.mxu0 %v203
  %424 = vmatpush1.msra.mxu0 %v202
  %425 = vmatprep.subr.mxu0 %v205
  %426 = vmatpush1.msra.mxu0 %v204
  %427 = vmatprep.subr.mxu0 %v207
  %428 = vmatpush1.msra.mxu0 %v206
  %429 = vmatprep.subr.mxu0 %v209
  %430 = vmatpush1.msra.mxu0 %v208
  %431 = vmatprep.subr.mxu0 %v211
  %432 = vmatpush1.msra.mxu0 %v210
  %433 = vmatprep.subr.mxu0 %v213
  %434 = vmatpush1.msra.mxu0 %v212
  %435 = vmatprep.subr.mxu0 %v215
  %436 = vmatpush1.msra.mxu0 %v214
  %437 = vmatprep.subr.mxu0 %v217
  %438 = vmatpush1.msra.mxu0 %v216
  %439 = vmatprep.subr.mxu0 %v219
  %440 = vmatpush1.msra.mxu0 %v218
  %441 = vmatprep.subr.mxu0 %v221
  %442 = vmatpush1.msra.mxu0 %v220
  %443 = vmatprep.subr.mxu0 %v223
  %444 = vmatpush1.msra.mxu0 %v222
  %445 = vmatprep.subr.mxu0 %v225
  %446 = vmatpush1.msra.mxu0 %v224
  %447 = vmatprep.subr.mxu0 %v227
  %448 = vmatpush1.msra.mxu0 %v226
  %449 = vmatprep.mubr.f32.mxu0 %v21
  %450 = vmatmul.mubr.f32.gmra.mrb[0].mxu0 %v20
  %v451 = vpop.f32.mrb[0].mxu0
  %v452 = vadd.f32 %v269, %v451
  %v453 = vpop.f32.mrb[0].mxu0
  %v454 = vadd.f32 %v273, %v453
  %455 = vmatprep.mubr.f32.mxu0 %v25
  %456 = vmatmul.mubr.f32.gmra.mrb[0].mxu0 %v24
  %v457 = vpop.f32.mrb[0].mxu0
  %v458 = vadd.f32 %v269, %v457
  %v459 = vpop.f32.mrb[0].mxu0
  %v460 = vadd.f32 %v273, %v459
  %461 = vmatprep.mubr.f32.mxu0 %v29
  %462 = vmatmul.mubr.f32.gmra.mrb[0].mxu0 %v28
  %v463 = vpop.f32.mrb[0].mxu0
  %v464 = vadd.f32 %v269, %v463
  %v465 = vpop.f32.mrb[0].mxu0
  %v466 = vadd.f32 %v273, %v465
  %467 = vmatprep.mubr.f32.mxu0 %v33
  %468 = vmatmul.mubr.f32.gmra.mrb[0].mxu0 %v32
  %v469 = vpop.f32.mrb[0].mxu0
  %v470 = vadd.f32 %v269, %v469
  %v471 = vpop.f32.mrb[0].mxu0
  %v472 = vadd.f32 %v273, %v471
  %473 = vmatprep.mubr.f32.mxu0 %v37
  %474 = vmatmul.mubr.f32.gmra.mrb[0].mxu0 %v36
  %v475 = vpop.f32.mrb[0].mxu0
  %v476 = vadd.f32 %v269, %v475
  %v477 = vpop.f32.mrb[0].mxu0
  %v478 = vadd.f32 %v273, %v477
  %479 = vmatprep.mubr.f32.mxu0 %v41
  %480 = vmatmul.mubr.f32.gmra.mrb[0].mxu0 %v40
  %v481 = vpop.f32.mrb[0].mxu0
  %v482 = vadd.f32 %v269, %v481
  %v483 = vpop.f32.mrb[0].mxu0
  %v484 = vadd.f32 %v273, %v483
  %485 = vmatprep.mubr.f32.mxu0 %v45
  %486 = vmatmul.mubr.f32.gmra.mrb[0].mxu0 %v44
  %v487 = vpop.f32.mrb[0].mxu0
  %v488 = vadd.f32 %v269, %v487
  %v489 = vpop.f32.mrb[0].mxu0
  %v490 = vadd.f32 %v273, %v489
  %491 = vmatprep.mubr.f32.mxu0 %v49
  %492 = vmatmul.mubr.f32.gmra.mrb[0].mxu0 %v48
  %v493 = vpop.f32.mrb[0].mxu0
  %v494 = vadd.f32 %v269, %v493
  %v495 = vpop.f32.mrb[0].mxu0
  %v496 = vadd.f32 %v273, %v495
  %497 = vmatprep.mubr.f32.mxu0 %v53
  %498 = vmatmul.mubr.f32.gmra.mrb[0].mxu0 %v52
  %v499 = vpop.f32.mrb[0].mxu0
  %v500 = vadd.f32 %v269, %v499
  %v501 = vpop.f32.mrb[0].mxu0
  %v502 = vadd.f32 %v273, %v501
  %503 = vmatprep.mubr.f32.mxu0 %v57
  %504 = vmatmul.mubr.f32.gmra.mrb[0].mxu0 %v56
  %v505 = vpop.f32.mrb[0].mxu0
  %v506 = vadd.f32 %v269, %v505
  %v507 = vpop.f32.mrb[0].mxu0
  %v508 = vadd.f32 %v273, %v507
  %509 = vmatprep.mubr.f32.mxu0 %v61
  %510 = vmatmul.mubr.f32.gmra.mrb[0].mxu0 %v60
  %v511 = vpop.f32.mrb[0].mxu0
  %v512 = vadd.f32 %v269, %v511
  %v513 = vpop.f32.mrb[0].mxu0
  %v514 = vadd.f32 %v273, %v513
  %515 = vmatprep.mubr.f32.mxu0 %v65
  %516 = vmatmul.mubr.f32.gmra.mrb[0].mxu0 %v64
  %v517 = vpop.f32.mrb[0].mxu0
  %v518 = vadd.f32 %v269, %v517
  %v519 = vpop.f32.mrb[0].mxu0
  %v520 = vadd.f32 %v273, %v519
  %521 = vmatprep.mubr.f32.mxu0 %v69
  %522 = vmatmul.mubr.f32.gmra.mrb[0].mxu0 %v68
  %v523 = vpop.f32.mrb[0].mxu0
  %v524 = vadd.f32 %v269, %v523
  %v525 = vpop.f32.mrb[0].mxu0
  %v526 = vadd.f32 %v273, %v525
  %527 = vmatprep.mubr.f32.mxu0 %v73
  %528 = vmatmul.mubr.f32.gmra.mrb[0].mxu0 %v72
  %v529 = vpop.f32.mrb[0].mxu0
  %v530 = vadd.f32 %v269, %v529
  %v531 = vpop.f32.mrb[0].mxu0
  %v532 = vadd.f32 %v273, %v531
  %533 = vmatprep.mubr.f32.mxu0 %v77
  %534 = vmatmul.mubr.f32.gmra.mrb[0].mxu0 %v76
  %v535 = vpop.f32.mrb[0].mxu0
  %v536 = vadd.f32 %v269, %v535
  %v537 = vpop.f32.mrb[0].mxu0
  %v538 = vadd.f32 %v273, %v537
  %539 = vmatprep.mubr.f32.mxu0 %v81
  %540 = vmatmul.mubr.f32.gmra.mrb[0].mxu0 %v80
  %v541 = vpop.f32.mrb[0].mxu0
  %v542 = vadd.f32 %v269, %v541
  %v543 = vpop.f32.mrb[0].mxu0
  %v544 = vadd.f32 %v273, %v543
  %545 = vmatprep.mubr.f32.mxu0 %v85
  %546 = vmatmul.mubr.f32.gmra.mrb[0].mxu0 %v84
  %v547 = vpop.f32.mrb[0].mxu0
  %v548 = vadd.f32 %v269, %v547
  %v549 = vpop.f32.mrb[0].mxu0
  %v550 = vadd.f32 %v273, %v549
  %551 = vmatprep.mubr.f32.mxu0 %v89
  %552 = vmatmul.mubr.f32.gmra.mrb[0].mxu0 %v88
  %v553 = vpop.f32.mrb[0].mxu0
  %v554 = vadd.f32 %v269, %v553
  %v555 = vpop.f32.mrb[0].mxu0
  %v556 = vadd.f32 %v273, %v555
  %557 = vmatprep.mubr.f32.mxu0 %v93
  %558 = vmatmul.mubr.f32.gmra.mrb[0].mxu0 %v92
  %v559 = vpop.f32.mrb[0].mxu0
  %v560 = vadd.f32 %v269, %v559
  %v561 = vpop.f32.mrb[0].mxu0
  %v562 = vadd.f32 %v273, %v561
  %563 = vmatprep.mubr.f32.mxu0 %v97
  %564 = vmatmul.mubr.f32.gmra.mrb[0].mxu0 %v96
  %v565 = vpop.f32.mrb[0].mxu0
  %v566 = vadd.f32 %v269, %v565
  %v567 = vpop.f32.mrb[0].mxu0
  %v568 = vadd.f32 %v273, %v567
  %569 = vmatprep.mubr.f32.mxu0 %v101
  %570 = vmatmul.mubr.f32.gmra.mrb[0].mxu0 %v100
  %v571 = vpop.f32.mrb[0].mxu0
  %v572 = vadd.f32 %v269, %v571
  %v573 = vpop.f32.mrb[0].mxu0
  %v574 = vadd.f32 %v273, %v573
  %575 = vmatprep.mubr.f32.mxu0 %v105
  %576 = vmatmul.mubr.f32.gmra.mrb[0].mxu0 %v104
  %v577 = vpop.f32.mrb[0].mxu0
  %v578 = vadd.f32 %v269, %v577
  %v579 = vpop.f32.mrb[0].mxu0
  %v580 = vadd.f32 %v273, %v579
  %581 = vmatprep.mubr.f32.mxu0 %v109
  %582 = vmatmul.mubr.f32.gmra.mrb[0].mxu0 %v108
  %v583 = vpop.f32.mrb[0].mxu0
  %v584 = vadd.f32 %v269, %v583
  %v585 = vpop.f32.mrb[0].mxu0
  %v586 = vadd.f32 %v273, %v585
  %587 = vmatprep.mubr.f32.mxu0 %v113
  %588 = vmatmul.mubr.f32.gmra.mrb[0].mxu0 %v112
  %v589 = vpop.f32.mrb[0].mxu0
  %v590 = vadd.f32 %v269, %v589
  %v591 = vpop.f32.mrb[0].mxu0
  %v592 = vadd.f32 %v273, %v591
  %593 = vmatprep.mubr.f32.mxu0 %v117
  %594 = vmatmul.mubr.f32.gmra.mrb[0].mxu0 %v116
  %v595 = vpop.f32.mrb[0].mxu0
  %v596 = vadd.f32 %v269, %v595
  %v597 = vpop.f32.mrb[0].mxu0
  %v598 = vadd.f32 %v273, %v597
  %599 = vmatprep.mubr.f32.mxu0 %v121
  %600 = vmatmul.mubr.f32.gmra.mrb[0].mxu0 %v120
  %v601 = vpop.f32.mrb[0].mxu0
  %v602 = vadd.f32 %v269, %v601
  %v603 = vpop.f32.mrb[0].mxu0
  %v604 = vadd.f32 %v273, %v603
  %605 = vmatprep.mubr.f32.mxu0 %v125
  %606 = vmatmul.mubr.f32.gmra.mrb[0].mxu0 %v124
  %v607 = vpop.f32.mrb[0].mxu0
  %v608 = vadd.f32 %v269, %v607
  %v609 = vpop.f32.mrb[0].mxu0
  %v610 = vadd.f32 %v273, %v609
  %611 = vmatprep.mubr.f32.mxu0 %v129
  %612 = vmatmul.mubr.f32.gmra.mrb[0].mxu0 %v128
  %v613 = vpop.f32.mrb[0].mxu0
  %v614 = vadd.f32 %v269, %v613
  %v615 = vpop.f32.mrb[0].mxu0
  %v616 = vadd.f32 %v273, %v615
  %617 = vmatprep.mubr.f32.mxu0 %v133
  %618 = vmatmul.mubr.f32.gmra.mrb[0].mxu0 %v132
  %v619 = vpop.f32.mrb[0].mxu0
  %v620 = vadd.f32 %v269, %v619
  %v621 = vpop.f32.mrb[0].mxu0
  %v622 = vadd.f32 %v273, %v621
  %623 = vmatprep.mubr.f32.mxu0 %v137
  %624 = vmatmul.mubr.f32.gmra.mrb[0].mxu0 %v136
  %v625 = vpop.f32.mrb[0].mxu0
  %v626 = vadd.f32 %v269, %v625
  %v627 = vpop.f32.mrb[0].mxu0
  %v628 = vadd.f32 %v273, %v627
  %629 = vmatprep.mubr.f32.mxu0 %v141
  %630 = vmatmul.mubr.f32.gmra.mrb[0].mxu0 %v140
  %v631 = vpop.f32.mrb[0].mxu0
  %v632 = vadd.f32 %v269, %v631
  %v633 = vpop.f32.mrb[0].mxu0
  %v634 = vadd.f32 %v273, %v633
  %635 = vmatprep.mubr.f32.mxu0 %v145
  %636 = vmatmul.mubr.f32.gmra.mrb[0].mxu0 %v144
  %v637 = vpop.f32.mrb[0].mxu0
  %v638 = vadd.f32 %v269, %v637
  %v639 = vpop.f32.mrb[0].mxu0
  %v640 = vadd.f32 %v273, %v639
  %641 = vmatprep.mubr.f32.mxu0 %v149
  %642 = vmatmul.mubr.f32.gmra.mrb[0].mxu0 %v148
  %v643 = vpop.f32.mrb[0].mxu0
  %v644 = vadd.f32 %v269, %v643
  %v645 = vpop.f32.mrb[0].mxu0
  %v646 = vadd.f32 %v273, %v645
  %647 = vmatprep.mubr.f32.mxu0 %v153
  %648 = vmatmul.mubr.f32.gmra.mrb[0].mxu0 %v152
  %v649 = vpop.f32.mrb[0].mxu0
  %v650 = vadd.f32 %v269, %v649
  %v651 = vpop.f32.mrb[0].mxu0
  %v652 = vadd.f32 %v273, %v651
  %653 = vmatprep.mubr.f32.mxu0 %v157
  %654 = vmatmul.mubr.f32.gmra.mrb[0].mxu0 %v156
  %v655 = vpop.f32.mrb[0].mxu0
  %v656 = vadd.f32 %v269, %v655
  %v657 = vpop.f32.mrb[0].mxu0
  %v658 = vadd.f32 %v273, %v657
  %659 = vmatprep.mubr.f32.mxu0 %v161
  %660 = vmatmul.mubr.f32.gmra.mrb[0].mxu0 %v160
  %v661 = vpop.f32.mrb[0].mxu0
  %v662 = vadd.f32 %v269, %v661
  %v663 = vpop.f32.mrb[0].mxu0
  %v664 = vadd.f32 %v273, %v663
  %665 = vdwg.mxu0
  %666 = vmatprep.subr.mxu0 %v229
  %667 = vmatpush1.msra.mxu0 %v228
  %668 = vmatprep.subr.mxu0 %v231
  %669 = vmatpush1.msra.mxu0 %v230
  %670 = vmatprep.subr.mxu0 %v233
  %671 = vmatpush1.msra.mxu0 %v232
  %672 = vmatprep.subr.mxu0 %v235
  %673 = vmatpush1.msra.mxu0 %v234
  %674 = vmatprep.subr.mxu0 %v237
  %675 = vmatpush1.msra.mxu0 %v236
  %676 = vmatprep.subr.mxu0 %v239
  %677 = vmatpush1.msra.mxu0 %v238
  %678 = vmatprep.subr.mxu0 %v241
  %679 = vmatpush1.msra.mxu0 %v240
  %680 = vmatprep.subr.mxu0 %v243
  %681 = vmatpush1.msra.mxu0 %v242
  %682 = vmatprep.subr.mxu0 %v245
  %683 = vmatpush1.msra.mxu0 %v244
  %684 = vmatprep.subr.mxu0 %v247
  %685 = vmatpush1.msra.mxu0 %v246
  %686 = vmatprep.subr.mxu0 %v249
  %687 = vmatpush1.msra.mxu0 %v248
  %688 = vmatprep.subr.mxu0 %v251
  %689 = vmatpush1.msra.mxu0 %v250
  %690 = vmatprep.subr.mxu0 %v253
  %691 = vmatpush1.msra.mxu0 %v252
  %692 = vmatprep.subr.mxu0 %v255
  %693 = vmatpush1.msra.mxu0 %v254
  %694 = vmatprep.subr.mxu0 %v257
  %695 = vmatpush1.msra.mxu0 %v256
  %696 = vmatprep.subr.mxu0 %v259
  %697 = vmatpush1.msra.mxu0 %v258
  %698 = vmatprep.subr.mxu0 %v261
  %699 = vmatpush1.msra.mxu0 %v260
  %700 = vmatprep.subr.mxu0 %v263
  %701 = vmatpush1.msra.mxu0 %v262
  %702 = vmatprep.subr.mxu0 0.0
  %703 = vmatpush1.msra.mxu0 0.0
  %704 = vmatprep.subr.mxu0 0.0
  %705 = vmatpush1.msra.mxu0 0.0
  %706 = vmatprep.subr.mxu0 0.0
  %707 = vmatpush1.msra.mxu0 0.0
  %708 = vmatprep.subr.mxu0 0.0
  %709 = vmatpush1.msra.mxu0 0.0
  %710 = vmatprep.subr.mxu0 0.0
  %711 = vmatpush1.msra.mxu0 0.0
  %712 = vmatprep.subr.mxu0 0.0
  %713 = vmatpush1.msra.mxu0 0.0
  %714 = vmatprep.subr.mxu0 0.0
  %715 = vmatpush1.msra.mxu0 0.0
  %716 = vmatprep.subr.mxu0 0.0
  %717 = vmatpush1.msra.mxu0 0.0
  %718 = vmatprep.subr.mxu0 0.0
  %719 = vmatpush1.msra.mxu0 0.0
  %720 = vmatprep.subr.mxu0 0.0
  %721 = vmatpush1.msra.mxu0 0.0
  %722 = vmatprep.subr.mxu0 0.0
  %723 = vmatpush1.msra.mxu0 0.0
  %724 = vmatprep.subr.mxu0 0.0
  %725 = vmatpush1.msra.mxu0 0.0
  %726 = vmatprep.subr.mxu0 0.0
  %727 = vmatpush1.msra.mxu0 0.0
  %728 = vmatprep.subr.mxu0 0.0
  %729 = vmatpush1.msra.mxu0 0.0
  %730 = vmatprep.mubr.f32.mxu0 %v278
  %731 = vmatmul.mubr.f32.gmra.mrb[0].mxu0 %v22
  %v732 = vpop.f32.mrb[0].mxu0
  %v733 = vadd.f32 %v452, %v732
  %v734 = vpop.f32.mrb[0].mxu0
  %v735 = vadd.f32 %v454, %v734
  %736 = vmatprep.mubr.f32.mxu0 %v281
  %737 = vmatmul.mubr.f32.gmra.mrb[0].mxu0 %v26
  %v738 = vpop.f32.mrb[0].mxu0
  %v739 = vadd.f32 %v458, %v738
  %v740 = vpop.f32.mrb[0].mxu0
  %v741 = vadd.f32 %v460, %v740
  %742 = vmatprep.mubr.f32.mxu0 %v284
  %743 = vmatmul.mubr.f32.gmra.mrb[0].mxu0 %v30
  %v744 = vpop.f32.mrb[0].mxu0
  %v745 = vadd.f32 %v464, %v744
  %v746 = vpop.f32.mrb[0].mxu0
  %v747 = vadd.f32 %v466, %v746
  %748 = vmatprep.mubr.f32.mxu0 %v287
  %749 = vmatmul.mubr.f32.gmra.mrb[0].mxu0 %v34
  %v750 = vpop.f32.mrb[0].mxu0
  %v751 = vadd.f32 %v470, %v750
  %v752 = vpop.f32.mrb[0].mxu0
  %v753 = vadd.f32 %v472, %v752
  %754 = vmatprep.mubr.f32.mxu0 %v290
  %755 = vmatmul.mubr.f32.gmra.mrb[0].mxu0 %v38
  %v756 = vpop.f32.mrb[0].mxu0
  %v757 = vadd.f32 %v476, %v756
  %v758 = vpop.f32.mrb[0].mxu0
  %v759 = vadd.f32 %v478, %v758
  %760 = vmatprep.mubr.f32.mxu0 %v293
  %761 = vmatmul.mubr.f32.gmra.mrb[0].mxu0 %v42
  %v762 = vpop.f32.mrb[0].mxu0
  %v763 = vadd.f32 %v482, %v762
  %v764 = vpop.f32.mrb[0].mxu0
  %v765 = vadd.f32 %v484, %v764
  %766 = vmatprep.mubr.f32.mxu0 %v296
  %767 = vmatmul.mubr.f32.gmra.mrb[0].mxu0 %v46
  %v768 = vpop.f32.mrb[0].mxu0
  %v769 = vadd.f32 %v488, %v768
  %v770 = vpop.f32.mrb[0].mxu0
  %v771 = vadd.f32 %v490, %v770
  %772 = vmatprep.mubr.f32.mxu0 %v299
  %773 = vmatmul.mubr.f32.gmra.mrb[0].mxu0 %v50
  %v774 = vpop.f32.mrb[0].mxu0
  %v775 = vadd.f32 %v494, %v774
  %v776 = vpop.f32.mrb[0].mxu0
  %v777 = vadd.f32 %v496, %v776
  %778 = vmatprep.mubr.f32.mxu0 %v302
  %779 = vmatmul.mubr.f32.gmra.mrb[0].mxu0 %v54
  %v780 = vpop.f32.mrb[0].mxu0
  %v781 = vadd.f32 %v500, %v780
  %v782 = vpop.f32.mrb[0].mxu0
  %v783 = vadd.f32 %v502, %v782
  %784 = vmatprep.mubr.f32.mxu0 %v305
  %785 = vmatmul.mubr.f32.gmra.mrb[0].mxu0 %v58
  %v786 = vpop.f32.mrb[0].mxu0
  %v787 = vadd.f32 %v506, %v786
  %v788 = vpop.f32.mrb[0].mxu0
  %v789 = vadd.f32 %v508, %v788
  %790 = vmatprep.mubr.f32.mxu0 %v308
  %791 = vmatmul.mubr.f32.gmra.mrb[0].mxu0 %v62
  %v792 = vpop.f32.mrb[0].mxu0
  %v793 = vadd.f32 %v512, %v792
  %v794 = vpop.f32.mrb[0].mxu0
  %v795 = vadd.f32 %v514, %v794
  %796 = vmatprep.mubr.f32.mxu0 %v311
  %797 = vmatmul.mubr.f32.gmra.mrb[0].mxu0 %v66
  %v798 = vpop.f32.mrb[0].mxu0
  %v799 = vadd.f32 %v518, %v798
  %v800 = vpop.f32.mrb[0].mxu0
  %v801 = vadd.f32 %v520, %v800
  %802 = vmatprep.mubr.f32.mxu0 %v314
  %803 = vmatmul.mubr.f32.gmra.mrb[0].mxu0 %v70
  %v804 = vpop.f32.mrb[0].mxu0
  %v805 = vadd.f32 %v524, %v804
  %v806 = vpop.f32.mrb[0].mxu0
  %v807 = vadd.f32 %v526, %v806
  %808 = vmatprep.mubr.f32.mxu0 %v317
  %809 = vmatmul.mubr.f32.gmra.mrb[0].mxu0 %v74
  %v810 = vpop.f32.mrb[0].mxu0
  %v811 = vadd.f32 %v530, %v810
  %v812 = vpop.f32.mrb[0].mxu0
  %v813 = vadd.f32 %v532, %v812
  %814 = vmatprep.mubr.f32.mxu0 %v320
  %815 = vmatmul.mubr.f32.gmra.mrb[0].mxu0 %v78
  %v816 = vpop.f32.mrb[0].mxu0
  %v817 = vadd.f32 %v536, %v816
  %v818 = vpop.f32.mrb[0].mxu0
  %v819 = vadd.f32 %v538, %v818
  %820 = vmatprep.mubr.f32.mxu0 %v323
  %821 = vmatmul.mubr.f32.gmra.mrb[0].mxu0 %v82
  %v822 = vpop.f32.mrb[0].mxu0
  %v823 = vadd.f32 %v542, %v822
  %v824 = vpop.f32.mrb[0].mxu0
  %v825 = vadd.f32 %v544, %v824
  %826 = vmatprep.mubr.f32.mxu0 %v326
  %827 = vmatmul.mubr.f32.gmra.mrb[0].mxu0 %v86
  %v828 = vpop.f32.mrb[0].mxu0
  %v829 = vadd.f32 %v548, %v828
  %v830 = vpop.f32.mrb[0].mxu0
  %v831 = vadd.f32 %v550, %v830
  %832 = vmatprep.mubr.f32.mxu0 %v329
  %833 = vmatmul.mubr.f32.gmra.mrb[0].mxu0 %v90
  %v834 = vpop.f32.mrb[0].mxu0
  %v835 = vadd.f32 %v554, %v834
  %v836 = vpop.f32.mrb[0].mxu0
  %v837 = vadd.f32 %v556, %v836
  %838 = vmatprep.mubr.f32.mxu0 %v332
  %839 = vmatmul.mubr.f32.gmra.mrb[0].mxu0 %v94
  %v840 = vpop.f32.mrb[0].mxu0
  %v841 = vadd.f32 %v560, %v840
  %v842 = vpop.f32.mrb[0].mxu0
  %v843 = vadd.f32 %v562, %v842
  %844 = vmatprep.mubr.f32.mxu0 %v335
  %845 = vmatmul.mubr.f32.gmra.mrb[0].mxu0 %v98
  %v846 = vpop.f32.mrb[0].mxu0
  %v847 = vadd.f32 %v566, %v846
  %v848 = vpop.f32.mrb[0].mxu0
  %v849 = vadd.f32 %v568, %v848
  %850 = vmatprep.mubr.f32.mxu0 %v338
  %851 = vmatmul.mubr.f32.gmra.mrb[0].mxu0 %v102
  %v852 = vpop.f32.mrb[0].mxu0
  %v853 = vadd.f32 %v572, %v852
  %v854 = vpop.f32.mrb[0].mxu0
  %v855 = vadd.f32 %v574, %v854
  %856 = vmatprep.mubr.f32.mxu0 %v341
  %857 = vmatmul.mubr.f32.gmra.mrb[0].mxu0 %v106
  %v858 = vpop.f32.mrb[0].mxu0
  %v859 = vadd.f32 %v578, %v858
  %v860 = vpop.f32.mrb[0].mxu0
  %v861 = vadd.f32 %v580, %v860
  %862 = vmatprep.mubr.f32.mxu0 %v344
  %863 = vmatmul.mubr.f32.gmra.mrb[0].mxu0 %v110
  %v864 = vpop.f32.mrb[0].mxu0
  %v865 = vadd.f32 %v584, %v864
  %v866 = vpop.f32.mrb[0].mxu0
  %v867 = vadd.f32 %v586, %v866
  %868 = vmatprep.mubr.f32.mxu0 %v347
  %869 = vmatmul.mubr.f32.gmra.mrb[0].mxu0 %v114
  %v870 = vpop.f32.mrb[0].mxu0
  %v871 = vadd.f32 %v590, %v870
  %v872 = vpop.f32.mrb[0].mxu0
  %v873 = vadd.f32 %v592, %v872
  %874 = vmatprep.mubr.f32.mxu0 %v350
  %875 = vmatmul.mubr.f32.gmra.mrb[0].mxu0 %v118
  %v876 = vpop.f32.mrb[0].mxu0
  %v877 = vadd.f32 %v596, %v876
  %v878 = vpop.f32.mrb[0].mxu0
  %v879 = vadd.f32 %v598, %v878
  %880 = vmatprep.mubr.f32.mxu0 %v353
  %881 = vmatmul.mubr.f32.gmra.mrb[0].mxu0 %v122
  %v882 = vpop.f32.mrb[0].mxu0
  %v883 = vadd.f32 %v602, %v882
  %v884 = vpop.f32.mrb[0].mxu0
  %v885 = vadd.f32 %v604, %v884
  %886 = vmatprep.mubr.f32.mxu0 %v356
  %887 = vmatmul.mubr.f32.gmra.mrb[0].mxu0 %v126
  %v888 = vpop.f32.mrb[0].mxu0
  %v889 = vadd.f32 %v608, %v888
  %v890 = vpop.f32.mrb[0].mxu0
  %v891 = vadd.f32 %v610, %v890
  %892 = vmatprep.mubr.f32.mxu0 %v359
  %893 = vmatmul.mubr.f32.gmra.mrb[0].mxu0 %v130
  %v894 = vpop.f32.mrb[0].mxu0
  %v895 = vadd.f32 %v614, %v894
  %v896 = vpop.f32.mrb[0].mxu0
  %v897 = vadd.f32 %v616, %v896
  %898 = vmatprep.mubr.f32.mxu0 %v362
  %899 = vmatmul.mubr.f32.gmra.mrb[0].mxu0 %v134
  %v900 = vpop.f32.mrb[0].mxu0
  %v901 = vadd.f32 %v620, %v900
  %v902 = vpop.f32.mrb[0].mxu0
  %v903 = vadd.f32 %v622, %v902
  %904 = vmatprep.mubr.f32.mxu0 %v365
  %905 = vmatmul.mubr.f32.gmra.mrb[0].mxu0 %v138
  %v906 = vpop.f32.mrb[0].mxu0
  %v907 = vadd.f32 %v626, %v906
  %v908 = vpop.f32.mrb[0].mxu0
  %v909 = vadd.f32 %v628, %v908
  %910 = vmatprep.mubr.f32.mxu0 %v368
  %911 = vmatmul.mubr.f32.gmra.mrb[0].mxu0 %v142
  %v912 = vpop.f32.mrb[0].mxu0
  %v913 = vadd.f32 %v632, %v912
  %v914 = vpop.f32.mrb[0].mxu0
  %v915 = vadd.f32 %v634, %v914
  %916 = vmatprep.mubr.f32.mxu0 %v371
  %917 = vmatmul.mubr.f32.gmra.mrb[0].mxu0 %v146
  %v918 = vpop.f32.mrb[0].mxu0
  %v919 = vadd.f32 %v638, %v918
  %v920 = vpop.f32.mrb[0].mxu0
  %v921 = vadd.f32 %v640, %v920
  %922 = vmatprep.mubr.f32.mxu0 %v374
  %923 = vmatmul.mubr.f32.gmra.mrb[0].mxu0 %v150
  %v924 = vpop.f32.mrb[0].mxu0
  %v925 = vadd.f32 %v644, %v924
  %v926 = vpop.f32.mrb[0].mxu0
  %v927 = vadd.f32 %v646, %v926
  %928 = vmatprep.mubr.f32.mxu0 %v377
  %929 = vmatmul.mubr.f32.gmra.mrb[0].mxu0 %v154
  %v930 = vpop.f32.mrb[0].mxu0
  %v931 = vadd.f32 %v650, %v930
  %v932 = vpop.f32.mrb[0].mxu0
  %v933 = vadd.f32 %v652, %v932
  %934 = vmatprep.mubr.f32.mxu0 %v380
  %935 = vmatmul.mubr.f32.gmra.mrb[0].mxu0 %v158
  %v936 = vpop.f32.mrb[0].mxu0
  %v937 = vadd.f32 %v656, %v936
  %v938 = vpop.f32.mrb[0].mxu0
  %v939 = vadd.f32 %v658, %v938
  %940 = vmatprep.mubr.f32.mxu0 %v383
  %941 = vmatmul.mubr.f32.gmra.mrb[0].mxu0 %v162
  %v942 = vpop.f32.mrb[0].mxu0
  %v943 = vadd.f32 %v662, %v942
  %v944 = vpop.f32.mrb[0].mxu0
  %v945 = vadd.f32 %v664, %v944
  %946 = vdwg.mxu0
  %v947 = vmax.f32 %v733, 0.0
  %v948 = vmax.f32 %v735, 0.0
  %v949 = vmax.f32 %v739, 0.0
  %v950 = vmax.f32 %v741, 0.0
  %v951 = vmax.f32 %v745, 0.0
  %v952 = vmax.f32 %v747, 0.0
  %v953 = vmax.f32 %v751, 0.0
  %v954 = vmax.f32 %v753, 0.0
  %v955 = vmax.f32 %v757, 0.0
  %v956 = vmax.f32 %v759, 0.0
  %v957 = vmax.f32 %v763, 0.0
  %v958 = vmax.f32 %v765, 0.0
  %v959 = vmax.f32 %v769, 0.0
  %v960 = vmax.f32 %v771, 0.0
  %v961 = vmax.f32 %v775, 0.0
  %v962 = vmax.f32 %v777, 0.0
  %v963 = vmax.f32 %v781, 0.0
  %v964 = vmax.f32 %v783, 0.0
  %v965 = vmax.f32 %v787, 0.0
  %v966 = vmax.f32 %v789, 0.0
  %v967 = vmax.f32 %v793, 0.0
  %v968 = vmax.f32 %v795, 0.0
  %v969 = vmax.f32 %v799, 0.0
  %v970 = vmax.f32 %v801, 0.0
  %v971 = vmax.f32 %v805, 0.0
  %v972 = vmax.f32 %v807, 0.0
  %v973 = vmax.f32 %v811, 0.0
  %v974 = vmax.f32 %v813, 0.0
  %v975 = vmax.f32 %v817, 0.0
  %v976 = vmax.f32 %v819, 0.0
  %v977 = vmax.f32 %v823, 0.0
  %v978 = vmax.f32 %v825, 0.0
  %v979 = vmax.f32 %v829, 0.0
  %v980 = vmax.f32 %v831, 0.0
  %v981 = vmax.f32 %v835, 0.0
  %v982 = vmax.f32 %v837, 0.0
  %v983 = vmax.f32 %v841, 0.0
  %v984 = vmax.f32 %v843, 0.0
  %v985 = vmax.f32 %v847, 0.0
  %v986 = vmax.f32 %v849, 0.0
  %v987 = vmax.f32 %v853, 0.0
  %v988 = vmax.f32 %v855, 0.0
  %v989 = vmax.f32 %v859, 0.0
  %v990 = vmax.f32 %v861, 0.0
  %v991 = vmax.f32 %v865, 0.0
  %v992 = vmax.f32 %v867, 0.0
  %v993 = vmax.f32 %v871, 0.0
  %v994 = vmax.f32 %v873, 0.0
  %v995 = vmax.f32 %v877, 0.0
  %v996 = vmax.f32 %v879, 0.0
  %v997 = vmax.f32 %v883, 0.0
  %v998 = vmax.f32 %v885, 0.0
  %v999 = vmax.f32 %v889, 0.0
  %v1000 = vmax.f32 %v891, 0.0
  %v1001 = vmax.f32 %v895, 0.0
  %v1002 = vmax.f32 %v897, 0.0
  %v1003 = vmax.f32 %v901, 0.0
  %v1004 = vmax.f32 %v903, 0.0
  %v1005 = vmax.f32 %v907, 0.0
  %v1006 = vmax.f32 %v909, 0.0
  %v1007 = vmax.f32 %v913, 0.0
  %v1008 = vmax.f32 %v915, 0.0
  %v1009 = vmax.f32 %v919, 0.0
  %v1010 = vmax.f32 %v921, 0.0
  %v1011 = vmax.f32 %v925, 0.0
  %v1012 = vmax.f32 %v927, 0.0
  %v1013 = vmax.f32 %v931, 0.0
  %v1014 = vmax.f32 %v933, 0.0
  %v1015 = vmax.f32 %v937, 0.0
  %v1016 = vmax.f32 %v939, 0.0
  %v1017 = vmax.f32 %v943, 0.0
  %v1018 = vmax.f32 %v945, 0.0
  %v1019 = vld [vmem:[%s3] sm:$0xff]
  %v1020 = vld [vmem:[%s3 + $0x8] sm:$0xff]
  %v1021 = vld [vmem:[%s3 + $0x10] sm:$0xff]
  %v1022 = vld [vmem:[%s3 + $0x18] sm:$0xff]
  %v1023 = vld [vmem:[%s3 + $0x20] sm:$0xff]
  %v1024 = vld [vmem:[%s3 + $0x28] sm:$0xff]
  %v1025 = vld [vmem:[%s3 + $0x30] sm:$0xff]
  %v1026 = vld [vmem:[%s3 + $0x38] sm:$0xff]
  %v1027 = vld [vmem:[%s3 + $0x40] sm:$0xff]
  %v1028 = vld [vmem:[%s3 + $0x48] sm:$0xff]
  %v1029 = vld [vmem:[%s3 + $0x50] sm:$0xff]
  %v1030 = vld [vmem:[%s3 + $0x58] sm:$0xff]
  %v1031 = vld [vmem:[%s3 + $0x60] sm:$0xff]
  %v1032 = vld [vmem:[%s3 + $0x68] sm:$0xff]
  %v1033 = vld [vmem:[%s3 + $0x70] sm:$0xff]
  %v1034 = vld [vmem:[%s3 + $0x78] sm:$0xff]
  %v1035 = vld [vmem:[%s3 + $0x80] sm:$0xf]
  %v1036 = vld [vmem:[%s4] sm:$0x1]
  %v1038 = vlaneseq
  %v1039 = vshrl.u32 %v1038, 7
  %v1040 = vsub.s32 0, %v1039
  %v1041 = vrot.slane %v1036, %v1040
  %vm1043 = vcmask 31744
  %v1045 = vsel %vm1043, %v948, 0
  %v1048 = vsel %vm1043, %v950, 0
  %v1051 = vsel %vm1043, %v952, 0
  %v1054 = vsel %vm1043, %v954, 0
  %v1057 = vsel %vm1043, %v956, 0
  %v1060 = vsel %vm1043, %v958, 0
  %v1063 = vsel %vm1043, %v960, 0
  %v1066 = vsel %vm1043, %v962, 0
  %v1069 = vsel %vm1043, %v964, 0
  %v1072 = vsel %vm1043, %v966, 0
  %v1075 = vsel %vm1043, %v968, 0
  %v1078 = vsel %vm1043, %v970, 0
  %v1081 = vsel %vm1043, %v972, 0
  %v1084 = vsel %vm1043, %v974, 0
  %v1087 = vsel %vm1043, %v976, 0
  %v1090 = vsel %vm1043, %v978, 0
  %v1093 = vsel %vm1043, %v980, 0
  %v1096 = vsel %vm1043, %v982, 0
  %v1099 = vsel %vm1043, %v984, 0
  %v1102 = vsel %vm1043, %v986, 0
  %v1105 = vsel %vm1043, %v988, 0
  %v1108 = vsel %vm1043, %v990, 0
  %v1111 = vsel %vm1043, %v992, 0
  %v1114 = vsel %vm1043, %v994, 0
  %v1117 = vsel %vm1043, %v996, 0
  %v1120 = vsel %vm1043, %v998, 0
  %v1123 = vsel %vm1043, %v1000, 0
  %v1126 = vsel %vm1043, %v1002, 0
  %v1129 = vsel %vm1043, %v1004, 0
  %v1132 = vsel %vm1043, %v1006, 0
  %v1135 = vsel %vm1043, %v1008, 0
  %v1138 = vsel %vm1043, %v1010, 0
  %v1141 = vsel %vm1043, %v1012, 0
  %v1144 = vsel %vm1043, %v1014, 0
  %v1147 = vsel %vm1043, %v1016, 0
  %v1150 = vsel %vm1043, %v1018, 0
  %vm1152 = vcmask 1043456
  %v1154 = vsel %vm1152, %v1035, 0
  %1156 = vmatprep.subr.mxu0 0.0
  %1157 = vmatpush1.msra.mxu0 %v1019
  %1158 = vmatprep.subr.mxu0 0.0
  %1159 = vmatpush1.msra.mxu0 %v1020
  %1160 = vmatprep.subr.mxu0 0.0
  %1161 = vmatpush1.msra.mxu0 %v1021
  %1162 = vmatprep.subr.mxu0 0.0
  %1163 = vmatpush1.msra.mxu0 %v1022
  %1164 = vmatprep.subr.mxu0 0.0
  %1165 = vmatpush1.msra.mxu0 %v1023
  %1166 = vmatprep.subr.mxu0 0.0
  %1167 = vmatpush1.msra.mxu0 %v1024
  %1168 = vmatprep.subr.mxu0 0.0
  %1169 = vmatpush1.msra.mxu0 %v1025
  %1170 = vmatprep.subr.mxu0 0.0
  %1171 = vmatpush1.msra.mxu0 %v1026
  %1172 = vmatprep.subr.mxu0 0.0
  %1173 = vmatpush1.msra.mxu0 %v1027
  %1174 = vmatprep.subr.mxu0 0.0
  %1175 = vmatpush1.msra.mxu0 %v1028
  %1176 = vmatprep.subr.mxu0 0.0
  %1177 = vmatpush1.msra.mxu0 %v1029
  %1178 = vmatprep.subr.mxu0 0.0
  %1179 = vmatpush1.msra.mxu0 %v1030
  %1180 = vmatprep.subr.mxu0 0.0
  %1181 = vmatpush1.msra.mxu0 %v1031
  %1182 = vmatprep.subr.mxu0 0.0
  %1183 = vmatpush1.msra.mxu0 %v1032
  %1184 = vmatprep.subr.mxu0 0.0
  %1185 = vmatpush1.msra.mxu0 %v1033
  %1186 = vmatprep.subr.mxu0 0.0
  %1187 = vmatpush1.msra.mxu0 %v1034
  %1188 = vmatprep.subr.mxu0 0.0
  %1189 = vmatpush1.msra.mxu0 %v1154
  %1190 = vmatprep.subr.mxu0 0.0
  %1191 = vmatpush1.msra.mxu0 0.0
  %1192 = vmatprep.subr.mxu0 0.0
  %1193 = vmatpush1.msra.mxu0 0.0
  %1194 = vmatprep.subr.mxu0 0.0
  %1195 = vmatpush1.msra.mxu0 0.0
  %1196 = vmatprep.subr.mxu0 0.0
  %1197 = vmatpush1.msra.mxu0 0.0
  %1198 = vmatprep.subr.mxu0 0.0
  %1199 = vmatpush1.msra.mxu0 0.0
  %1200 = vmatprep.subr.mxu0 0.0
  %1201 = vmatpush1.msra.mxu0 0.0
  %1202 = vmatprep.subr.mxu0 0.0
  %1203 = vmatpush1.msra.mxu0 0.0
  %1204 = vmatprep.subr.mxu0 0.0
  %1205 = vmatpush1.msra.mxu0 0.0
  %1206 = vmatprep.subr.mxu0 0.0
  %1207 = vmatpush1.msra.mxu0 0.0
  %1208 = vmatprep.subr.mxu0 0.0
  %1209 = vmatpush1.msra.mxu0 0.0
  %1210 = vmatprep.subr.mxu0 0.0
  %1211 = vmatpush1.msra.mxu0 0.0
  %1212 = vmatprep.subr.mxu0 0.0
  %1213 = vmatpush1.msra.mxu0 0.0
  %1214 = vmatprep.subr.mxu0 0.0
  %1215 = vmatpush1.msra.mxu0 0.0
  %1216 = vmatprep.subr.mxu0 0.0
  %1217 = vmatpush1.msra.mxu0 0.0
  %1218 = vmatprep.subr.mxu0 0.0
  %1219 = vmatpush1.msra.mxu0 0.0
  %1220 = vmatprep.mubr.f32.mxu0 %v1045
  %1221 = vmatmul.mubr.f32.gmra.mrb[0].mxu0 %v947
  %v1222 = vpop.f32.mrb[0].mxu0
  %v1223 = vadd.f32 %v1041, %v1222
  %v1224 = vpop.f32.mrb[0].mxu0
  %1225 = vmatprep.mubr.f32.mxu0 %v1048
  %1226 = vmatmul.mubr.f32.gmra.mrb[0].mxu0 %v949
  %v1227 = vpop.f32.mrb[0].mxu0
  %v1228 = vadd.f32 %v1041, %v1227
  %v1229 = vpop.f32.mrb[0].mxu0
  %1230 = vmatprep.mubr.f32.mxu0 %v1051
  %1231 = vmatmul.mubr.f32.gmra.mrb[0].mxu0 %v951
  %v1232 = vpop.f32.mrb[0].mxu0
  %v1233 = vadd.f32 %v1041, %v1232
  %v1234 = vpop.f32.mrb[0].mxu0
  %1235 = vmatprep.mubr.f32.mxu0 %v1054
  %1236 = vmatmul.mubr.f32.gmra.mrb[0].mxu0 %v953
  %v1237 = vpop.f32.mrb[0].mxu0
  %v1238 = vadd.f32 %v1041, %v1237
  %v1239 = vpop.f32.mrb[0].mxu0
  %1240 = vmatprep.mubr.f32.mxu0 %v1057
  %1241 = vmatmul.mubr.f32.gmra.mrb[0].mxu0 %v955
  %v1242 = vpop.f32.mrb[0].mxu0
  %v1243 = vadd.f32 %v1041, %v1242
  %v1244 = vpop.f32.mrb[0].mxu0
  %1245 = vmatprep.mubr.f32.mxu0 %v1060
  %1246 = vmatmul.mubr.f32.gmra.mrb[0].mxu0 %v957
  %v1247 = vpop.f32.mrb[0].mxu0
  %v1248 = vadd.f32 %v1041, %v1247
  %v1249 = vpop.f32.mrb[0].mxu0
  %1250 = vmatprep.mubr.f32.mxu0 %v1063
  %1251 = vmatmul.mubr.f32.gmra.mrb[0].mxu0 %v959
  %v1252 = vpop.f32.mrb[0].mxu0
  %v1253 = vadd.f32 %v1041, %v1252
  %v1254 = vpop.f32.mrb[0].mxu0
  %1255 = vmatprep.mubr.f32.mxu0 %v1066
  %1256 = vmatmul.mubr.f32.gmra.mrb[0].mxu0 %v961
  %v1257 = vpop.f32.mrb[0].mxu0
  %v1258 = vadd.f32 %v1041, %v1257
  %v1259 = vpop.f32.mrb[0].mxu0
  %1260 = vmatprep.mubr.f32.mxu0 %v1069
  %1261 = vmatmul.mubr.f32.gmra.mrb[0].mxu0 %v963
  %v1262 = vpop.f32.mrb[0].mxu0
  %v1263 = vadd.f32 %v1041, %v1262
  %v1264 = vpop.f32.mrb[0].mxu0
  %1265 = vmatprep.mubr.f32.mxu0 %v1072
  %1266 = vmatmul.mubr.f32.gmra.mrb[0].mxu0 %v965
  %v1267 = vpop.f32.mrb[0].mxu0
  %v1268 = vadd.f32 %v1041, %v1267
  %v1269 = vpop.f32.mrb[0].mxu0
  %1270 = vmatprep.mubr.f32.mxu0 %v1075
  %1271 = vmatmul.mubr.f32.gmra.mrb[0].mxu0 %v967
  %v1272 = vpop.f32.mrb[0].mxu0
  %v1273 = vadd.f32 %v1041, %v1272
  %v1274 = vpop.f32.mrb[0].mxu0
  %1275 = vmatprep.mubr.f32.mxu0 %v1078
  %1276 = vmatmul.mubr.f32.gmra.mrb[0].mxu0 %v969
  %v1277 = vpop.f32.mrb[0].mxu0
  %v1278 = vadd.f32 %v1041, %v1277
  %v1279 = vpop.f32.mrb[0].mxu0
  %1280 = vmatprep.mubr.f32.mxu0 %v1081
  %1281 = vmatmul.mubr.f32.gmra.mrb[0].mxu0 %v971
  %v1282 = vpop.f32.mrb[0].mxu0
  %v1283 = vadd.f32 %v1041, %v1282
  %v1284 = vpop.f32.mrb[0].mxu0
  %1285 = vmatprep.mubr.f32.mxu0 %v1084
  %1286 = vmatmul.mubr.f32.gmra.mrb[0].mxu0 %v973
  %v1287 = vpop.f32.mrb[0].mxu0
  %v1288 = vadd.f32 %v1041, %v1287
  %v1289 = vpop.f32.mrb[0].mxu0
  %1290 = vmatprep.mubr.f32.mxu0 %v1087
  %1291 = vmatmul.mubr.f32.gmra.mrb[0].mxu0 %v975
  %v1292 = vpop.f32.mrb[0].mxu0
  %v1293 = vadd.f32 %v1041, %v1292
  %v1294 = vpop.f32.mrb[0].mxu0
  %1295 = vmatprep.mubr.f32.mxu0 %v1090
  %1296 = vmatmul.mubr.f32.gmra.mrb[0].mxu0 %v977
  %v1297 = vpop.f32.mrb[0].mxu0
  %v1298 = vadd.f32 %v1041, %v1297
  %v1299 = vpop.f32.mrb[0].mxu0
  %1300 = vmatprep.mubr.f32.mxu0 %v1093
  %1301 = vmatmul.mubr.f32.gmra.mrb[0].mxu0 %v979
  %v1302 = vpop.f32.mrb[0].mxu0
  %v1303 = vadd.f32 %v1041, %v1302
  %v1304 = vpop.f32.mrb[0].mxu0
  %1305 = vmatprep.mubr.f32.mxu0 %v1096
  %1306 = vmatmul.mubr.f32.gmra.mrb[0].mxu0 %v981
  %v1307 = vpop.f32.mrb[0].mxu0
  %v1308 = vadd.f32 %v1041, %v1307
  %v1309 = vpop.f32.mrb[0].mxu0
  %1310 = vmatprep.mubr.f32.mxu0 %v1099
  %1311 = vmatmul.mubr.f32.gmra.mrb[0].mxu0 %v983
  %v1312 = vpop.f32.mrb[0].mxu0
  %v1313 = vadd.f32 %v1041, %v1312
  %v1314 = vpop.f32.mrb[0].mxu0
  %1315 = vmatprep.mubr.f32.mxu0 %v1102
  %1316 = vmatmul.mubr.f32.gmra.mrb[0].mxu0 %v985
  %v1317 = vpop.f32.mrb[0].mxu0
  %v1318 = vadd.f32 %v1041, %v1317
  %v1319 = vpop.f32.mrb[0].mxu0
  %1320 = vmatprep.mubr.f32.mxu0 %v1105
  %1321 = vmatmul.mubr.f32.gmra.mrb[0].mxu0 %v987
  %v1322 = vpop.f32.mrb[0].mxu0
  %v1323 = vadd.f32 %v1041, %v1322
  %v1324 = vpop.f32.mrb[0].mxu0
  %1325 = vmatprep.mubr.f32.mxu0 %v1108
  %1326 = vmatmul.mubr.f32.gmra.mrb[0].mxu0 %v989
  %v1327 = vpop.f32.mrb[0].mxu0
  %v1328 = vadd.f32 %v1041, %v1327
  %v1329 = vpop.f32.mrb[0].mxu0
  %1330 = vmatprep.mubr.f32.mxu0 %v1111
  %1331 = vmatmul.mubr.f32.gmra.mrb[0].mxu0 %v991
  %v1332 = vpop.f32.mrb[0].mxu0
  %v1333 = vadd.f32 %v1041, %v1332
  %v1334 = vpop.f32.mrb[0].mxu0
  %1335 = vmatprep.mubr.f32.mxu0 %v1114
  %1336 = vmatmul.mubr.f32.gmra.mrb[0].mxu0 %v993
  %v1337 = vpop.f32.mrb[0].mxu0
  %v1338 = vadd.f32 %v1041, %v1337
  %v1339 = vpop.f32.mrb[0].mxu0
  %1340 = vmatprep.mubr.f32.mxu0 %v1117
  %1341 = vmatmul.mubr.f32.gmra.mrb[0].mxu0 %v995
  %v1342 = vpop.f32.mrb[0].mxu0
  %v1343 = vadd.f32 %v1041, %v1342
  %v1344 = vpop.f32.mrb[0].mxu0
  %1345 = vmatprep.mubr.f32.mxu0 %v1120
  %1346 = vmatmul.mubr.f32.gmra.mrb[0].mxu0 %v997
  %v1347 = vpop.f32.mrb[0].mxu0
  %v1348 = vadd.f32 %v1041, %v1347
  %v1349 = vpop.f32.mrb[0].mxu0
  %1350 = vmatprep.mubr.f32.mxu0 %v1123
  %1351 = vmatmul.mubr.f32.gmra.mrb[0].mxu0 %v999
  %v1352 = vpop.f32.mrb[0].mxu0
  %v1353 = vadd.f32 %v1041, %v1352
  %v1354 = vpop.f32.mrb[0].mxu0
  %1355 = vmatprep.mubr.f32.mxu0 %v1126
  %1356 = vmatmul.mubr.f32.gmra.mrb[0].mxu0 %v1001
  %v1357 = vpop.f32.mrb[0].mxu0
  %v1358 = vadd.f32 %v1041, %v1357
  %v1359 = vpop.f32.mrb[0].mxu0
  %1360 = vmatprep.mubr.f32.mxu0 %v1129
  %1361 = vmatmul.mubr.f32.gmra.mrb[0].mxu0 %v1003
  %v1362 = vpop.f32.mrb[0].mxu0
  %v1363 = vadd.f32 %v1041, %v1362
  %v1364 = vpop.f32.mrb[0].mxu0
  %1365 = vmatprep.mubr.f32.mxu0 %v1132
  %1366 = vmatmul.mubr.f32.gmra.mrb[0].mxu0 %v1005
  %v1367 = vpop.f32.mrb[0].mxu0
  %v1368 = vadd.f32 %v1041, %v1367
  %v1369 = vpop.f32.mrb[0].mxu0
  %1370 = vmatprep.mubr.f32.mxu0 %v1135
  %1371 = vmatmul.mubr.f32.gmra.mrb[0].mxu0 %v1007
  %v1372 = vpop.f32.mrb[0].mxu0
  %v1373 = vadd.f32 %v1041, %v1372
  %v1374 = vpop.f32.mrb[0].mxu0
  %1375 = vmatprep.mubr.f32.mxu0 %v1138
  %1376 = vmatmul.mubr.f32.gmra.mrb[0].mxu0 %v1009
  %v1377 = vpop.f32.mrb[0].mxu0
  %v1378 = vadd.f32 %v1041, %v1377
  %v1379 = vpop.f32.mrb[0].mxu0
  %1380 = vmatprep.mubr.f32.mxu0 %v1141
  %1381 = vmatmul.mubr.f32.gmra.mrb[0].mxu0 %v1011
  %v1382 = vpop.f32.mrb[0].mxu0
  %v1383 = vadd.f32 %v1041, %v1382
  %v1384 = vpop.f32.mrb[0].mxu0
  %1385 = vmatprep.mubr.f32.mxu0 %v1144
  %1386 = vmatmul.mubr.f32.gmra.mrb[0].mxu0 %v1013
  %v1387 = vpop.f32.mrb[0].mxu0
  %v1388 = vadd.f32 %v1041, %v1387
  %v1389 = vpop.f32.mrb[0].mxu0
  %1390 = vmatprep.mubr.f32.mxu0 %v1147
  %1391 = vmatmul.mubr.f32.gmra.mrb[0].mxu0 %v1015
  %v1392 = vpop.f32.mrb[0].mxu0
  %v1393 = vadd.f32 %v1041, %v1392
  %v1394 = vpop.f32.mrb[0].mxu0
  %1395 = vmatprep.mubr.f32.mxu0 %v1150
  %1396 = vmatmul.mubr.f32.gmra.mrb[0].mxu0 %v1017
  %v1397 = vpop.f32.mrb[0].mxu0
  %v1398 = vadd.f32 %v1041, %v1397
  %v1399 = vpop.f32.mrb[0].mxu0
  %1400 = vdwg.mxu0
  %1401 = vst.msk [vmem:[%s5] sm:$0xff] %vm276, %v1223
  %1402 = vst.msk [vmem:[%s5 + $0x8] sm:$0xff] %vm276, %v1228
  %1403 = vst.msk [vmem:[%s5 + $0x10] sm:$0xff] %vm276, %v1233
  %1404 = vst.msk [vmem:[%s5 + $0x18] sm:$0xff] %vm276, %v1238
  %1405 = vst.msk [vmem:[%s5 + $0x20] sm:$0xff] %vm276, %v1243
  %1406 = vst.msk [vmem:[%s5 + $0x28] sm:$0xff] %vm276, %v1248
  %1407 = vst.msk [vmem:[%s5 + $0x30] sm:$0xff] %vm276, %v1253
  %1408 = vst.msk [vmem:[%s5 + $0x38] sm:$0xff] %vm276, %v1258
  %1409 = vst.msk [vmem:[%s5 + $0x40] sm:$0xff] %vm276, %v1263
  %1410 = vst.msk [vmem:[%s5 + $0x48] sm:$0xff] %vm276, %v1268
  %1411 = vst.msk [vmem:[%s5 + $0x50] sm:$0xff] %vm276, %v1273
  %1412 = vst.msk [vmem:[%s5 + $0x58] sm:$0xff] %vm276, %v1278
  %1413 = vst.msk [vmem:[%s5 + $0x60] sm:$0xff] %vm276, %v1283
  %1414 = vst.msk [vmem:[%s5 + $0x68] sm:$0xff] %vm276, %v1288
  %1415 = vst.msk [vmem:[%s5 + $0x70] sm:$0xff] %vm276, %v1293
  %1416 = vst.msk [vmem:[%s5 + $0x78] sm:$0xff] %vm276, %v1298
  %1417 = vst.msk [vmem:[%s5 + $0x80] sm:$0xff] %vm276, %v1303
  %1418 = vst.msk [vmem:[%s5 + $0x88] sm:$0xff] %vm276, %v1308
  %1419 = vst.msk [vmem:[%s5 + $0x90] sm:$0xff] %vm276, %v1313
  %1420 = vst.msk [vmem:[%s5 + $0x98] sm:$0xff] %vm276, %v1318
  %1421 = vst.msk [vmem:[%s5 + $0xa0] sm:$0xff] %vm276, %v1323
  %1422 = vst.msk [vmem:[%s5 + $0xa8] sm:$0xff] %vm276, %v1328
  %1423 = vst.msk [vmem:[%s5 + $0xb0] sm:$0xff] %vm276, %v1333
  %1424 = vst.msk [vmem:[%s5 + $0xb8] sm:$0xff] %vm276, %v1338
  %1425 = vst.msk [vmem:[%s5 + $0xc0] sm:$0xff] %vm276, %v1343
  %1426 = vst.msk [vmem:[%s5 + $0xc8] sm:$0xff] %vm276, %v1348
  %1427 = vst.msk [vmem:[%s5 + $0xd0] sm:$0xff] %vm276, %v1353
  %1428 = vst.msk [vmem:[%s5 + $0xd8] sm:$0xff] %vm276, %v1358
  %1429 = vst.msk [vmem:[%s5 + $0xe0] sm:$0xff] %vm276, %v1363
  %1430 = vst.msk [vmem:[%s5 + $0xe8] sm:$0xff] %vm276, %v1368
  %1431 = vst.msk [vmem:[%s5 + $0xf0] sm:$0xff] %vm276, %v1373
  %1432 = vst.msk [vmem:[%s5 + $0xf8] sm:$0xff] %vm276, %v1378
  %1433 = vst.msk [vmem:[%s5 + $0x100] sm:$0xff] %vm276, %v1383
  %1434 = vst.msk [vmem:[%s5 + $0x108] sm:$0xff] %vm276, %v1388
  %1435 = vst.msk [vmem:[%s5 + $0x110] sm:$0xff] %vm276, %v1393
  %1436 = vst.msk [vmem:[%s5 + $0x118] sm:$0xff] %vm276, %v1398
  // Predicated region
  $region22: #{model_forward.1} parent=0 // pred_check
    _
  $region23: #{model_forward.1} parent=0 // pred_check_branch
    %1438 = sbr.rel (0) target = $region25
  $region24: #{model_forward.1} parent=0 // pred_region
    _
  $region25: #{model_forward.1} parent=0 // pred_fallthru
    _
  // Predicated region
  $region26: #{model_forward.1} parent=0 // pred_check
    _
  $region27: #{model_forward.1} parent=0 // pred_check_branch
    %1440 = sbr.rel (0) target = $region29
  $region28: #{model_forward.1} parent=0 // pred_region
    _
  $region29: #{model_forward.1} parent=0 // pred_fallthru
    _

</llo_original>
